<compile_context>
chip_gen: v6e
topology: v6e:2x2x1
jax: 0.10.0
libtpu: 0.0.40
codegen_flags: <defaults>
</compile_context>

<pallas_src>
import math
from functools import partial

import jax
import jax.numpy as jnp
import numpy as np
from jax.experimental import pallas as pl
from jax.experimental.pallas import tpu as pltpu

_INV_SQRT2 = 0.7071067811865476  # precomputed 1/sqrt(2): multiply, not divide


def artist_kernel(
    state_ref,   # [B, ds]
    w1_ref,      # [ds, h]
    b12_ref,     # [2, h]    row 0 = b1, row 1 = b2
    w2_ref,      # [h, h]
    wh_ref,      # [h, dout] dout = da + da*da (mean | flattened-tril cholesky)
    aux_ref,     # [5, dout] rows: b_heads, is_mean, is_diag, scale, offset
    out_ref,     # [B, dout]
):
    x = state_ref[...]

    # ---- encoder MLP: (Linear -> ReLU -> Dropout[identity]) x 2 ----
    h = jnp.dot(x, w1_ref[...], preferred_element_type=jnp.float32) + b12_ref[0:1, :]
    h = jnp.maximum(h, 0.0)
    h = jnp.dot(h, w2_ref[...], preferred_element_type=jnp.float32) + b12_ref[1:2, :]
    h = jnp.maximum(h, 0.0)

    # ---- fused heads: [mean_pre | cholesky_flat_pre] in one matmul ----
    pre = jnp.dot(h, wh_ref[...], preferred_element_type=jnp.float32) + aux_ref[0:1, :]

    is_mean = aux_ref[1:2, :]   # 1.0 on the first da columns
    is_diag = aux_ref[2:3, :]   # 1.0 on cholesky-diagonal flat positions
    scale = aux_ref[3:4, :]     # (high - low) on mean cols, 1 elsewhere
    offset = aux_ref[4:5, :]    # low on mean cols, 0 elsewhere

    # mean columns: sigmoid; cholesky columns: identity
    v = jnp.where(is_mean > 0.5, jax.nn.sigmoid(pre), pre)
    # exact (erf) GELU on the cholesky-diagonal columns only
    g = 0.5 * v * (1.0 + jax.lax.erf(v * _INV_SQRT2))
    v = jnp.where(is_diag > 0.5, g, v)

    # single lane-packed store: [low + (high-low)*sigmoid(mean) | cholesky_flat]
    out_ref[...] = offset + scale * v


@partial(jax.jit, static_argnames=("da",))
def multivariate_normal_artist_forward(state, params, action_low, action_high, *, da):
    """Fused Pallas forward. Returns (mean [B, da], cholesky [B, da, da])."""
    B = state.shape[0]
    w1, b1, w2, b2, wm, bm, wc, bc = params
    h1 = w1.shape[1]
    h2 = w2.shape[1]
    assert h1 == h2, "bias packing assumes equal encoder widths"
    dout = da + da * da

    # --- trace-time constants (baked into the jitted computation) ---
    tril_r, tril_c = np.tril_indices(da)
    flat_idx = (tril_r * da + tril_c).astype(np.int32)        # packed -> flat
    diag_flat = da + np.arange(da, dtype=np.int32) * (da + 1)  # diag cols in out

    is_mean = np.zeros((1, dout), np.float32)
    is_mean[0, :da] = 1.0
    is_diag = np.zeros((1, dout), np.float32)
    is_diag[0, diag_flat] = 1.0

    # --- fold the one-hot scatter into the cholesky head weights/bias ---
    wc_flat = jnp.zeros((h2, da * da), jnp.float32).at[:, flat_idx].set(wc)
    bc_flat = jnp.zeros((1, da * da), jnp.float32).at[:, flat_idx].set(bc)
    w_heads = jnp.concatenate([wm, wc_flat], axis=1)            # [h2, dout]
    b_heads = jnp.concatenate([bm, bc_flat], axis=1)            # [1, dout]

    # --- mean rescale folded into per-column scale/offset rows ---
    scale = jnp.concatenate(
        [action_high - action_low, jnp.ones((1, da * da), jnp.float32)], axis=1)
    offset = jnp.concatenate(
        [action_low, jnp.zeros((1, da * da), jnp.float32)], axis=1)

    aux = jnp.concatenate(
        [b_heads, jnp.asarray(is_mean), jnp.asarray(is_diag), scale, offset], axis=0)
    b12 = jnp.concatenate([b1, b2], axis=0)                     # [2, h]

    vmem = pl.BlockSpec(memory_space=pltpu.VMEM)
    out = pl.pallas_call(
        artist_kernel,
        out_shape=jax.ShapeDtypeStruct((B, dout), jnp.float32),
        in_specs=[vmem] * 6,
        out_specs=vmem,
    )(state, w1, b12, w2, w_heads, aux)

    mean = out[:, :da]
    cholesky = out[:, da:].reshape(B, da, da)
    return mean, cholesky


def _reference_forward(state, params, action_low, action_high, da):
    """Pure-JAX reference mirroring the PyTorch forward (eval mode)."""
    w1, b1, w2, b2, wm, bm, wc, bc = params
    x = jnp.maximum(state @ w1 + b1, 0.0)
    x = jnp.maximum(x @ w2 + b2, 0.0)
    mean = jax.nn.sigmoid(x @ wm + bm)
    mean = action_low + (action_high - action_low) * mean
    cv = x @ wc + bc
    diag_idx = (np.arange(1, da + 1) * (np.arange(1, da + 1) + 1)) // 2 - 1
    cv = cv.at[:, diag_idx].set(jax.nn.gelu(cv[:, diag_idx], approximate=False))
    tril_r, tril_c = np.tril_indices(da)
    chol = jnp.zeros((state.shape[0], da, da), jnp.float32)
    chol = chol.at[:, tril_r, tril_c].set(cv)
    return mean, chol


def _linear_init(key, fan_in, fan_out):
    # deterministic, PyTorch-Linear-style uniform init
    kw, kb = jax.random.split(key)
    bound = 1.0 / math.sqrt(fan_in)
    w = jax.random.uniform(kw, (fan_in, fan_out), jnp.float32, -bound, bound)
    b = jax.random.uniform(kb, (1, fan_out), jnp.float32, -bound, bound)
    return w, b


if __name__ == "__main__":
    key = jax.random.PRNGKey(0)

    B = 8
    ds = 4           # observation dim
    da = ds          # action dim (module sets da = ds)
    dc = da * (da + 1) // 2
    h1, h2 = 32, 32  # encoder_layers

    k_state, k1, k2, k3, k4 = jax.random.split(key, 5)
    state = jax.random.normal(k_state, (B, ds), jnp.float32)

    w1, b1 = _linear_init(k1, ds, h1)
    w2, b2 = _linear_init(k2, h1, h2)
    wm, bm = _linear_init(k3, h2, da)
    wc, bc = _linear_init(k4, h2, dc)
    params = (w1, b1, w2, b2, wm, bm, wc, bc)

    action_low = -jnp.ones((1, da), jnp.float32)
    action_high = jnp.ones((1, da), jnp.float32)

    mean, cholesky = multivariate_normal_artist_forward(
        state, params, action_low, action_high, da=da
    )
    jax.block_until_ready((mean, cholesky))

    mean_ref, chol_ref = _reference_forward(state, params, action_low, action_high, da)
    np.testing.assert_allclose(np.asarray(mean), np.asarray(mean_ref), rtol=1e-5, atol=1e-5)
    np.testing.assert_allclose(np.asarray(cholesky), np.asarray(chol_ref), rtol=1e-5, atol=1e-5)

    assert mean.shape == (B, da) and cholesky.shape == (B, da, da)
    print("KERNEL_OK")
</pallas_src>

<mosaic_0001>
module attributes {stable_mosaic.version = 11 : i64} {
  func.func @artist_kernel(%arg0: memref<8x4xf32, #tpu.memory_space<vmem>>, %arg1: memref<4x32xf32, #tpu.memory_space<vmem>>, %arg2: memref<2x32xf32, #tpu.memory_space<vmem>>, %arg3: memref<32x32xf32, #tpu.memory_space<vmem>>, %arg4: memref<32x20xf32, #tpu.memory_space<vmem>>, %arg5: memref<5x20xf32, #tpu.memory_space<vmem>>, %arg6: memref<8x20xf32, #tpu.memory_space<vmem>>) attributes {dimension_semantics = [], scalar_prefetch = 0 : i64, scratch_operands = 0 : i64, tpu.core_type = #tpu.core_type<tc>} {
    %c0 = arith.constant 0 : index
    %c0_0 = arith.constant 0 : index
    %0 = vector.load %arg0[%c0, %c0_0] : memref<8x4xf32, #tpu.memory_space<vmem>>, vector<8x4xf32>
    %c0_1 = arith.constant 0 : index
    %c0_2 = arith.constant 0 : index
    %1 = vector.load %arg1[%c0_1, %c0_2] : memref<4x32xf32, #tpu.memory_space<vmem>>, vector<4x32xf32>
    %cst = arith.constant dense<0.000000e+00> : vector<8x32xf32>
    %2 = tpu.matmul %0, %1, %cst {dimension_numbers = #tpu.dot_dimension_numbers<[1], [0], [0], [1], [0, 0, 1, 1], [], []>} : vector<8x4xf32>, vector<4x32xf32>, vector<8x32xf32> -> vector<8x32xf32>
    %c0_3 = arith.constant 0 : index
    %c0_4 = arith.constant 0 : index
    %3 = vector.load %arg2[%c0_3, %c0_4] : memref<2x32xf32, #tpu.memory_space<vmem>>, vector<1x32xf32>
    %4 = vector.broadcast %3 : vector<1x32xf32> to vector<8x32xf32>
    %5 = arith.addf %2, %4 : vector<8x32xf32>
    %cst_5 = arith.constant 0.000000e+00 : f32
    %6 = vector.broadcast %cst_5 : f32 to vector<8x32xf32>
    %7 = arith.maximumf %5, %6 : vector<8x32xf32>
    %c0_6 = arith.constant 0 : index
    %c0_7 = arith.constant 0 : index
    %8 = vector.load %arg3[%c0_6, %c0_7] : memref<32x32xf32, #tpu.memory_space<vmem>>, vector<32x32xf32>
    %cst_8 = arith.constant dense<0.000000e+00> : vector<8x32xf32>
    %9 = tpu.matmul %7, %8, %cst_8 {dimension_numbers = #tpu.dot_dimension_numbers<[1], [0], [0], [1], [0, 0, 1, 1], [], []>} : vector<8x32xf32>, vector<32x32xf32>, vector<8x32xf32> -> vector<8x32xf32>
    %c1 = arith.constant 1 : index
    %c0_9 = arith.constant 0 : index
    %10 = vector.load %arg2[%c1, %c0_9] : memref<2x32xf32, #tpu.memory_space<vmem>>, vector<1x32xf32>
    %11 = vector.broadcast %10 : vector<1x32xf32> to vector<8x32xf32>
    %12 = arith.addf %9, %11 : vector<8x32xf32>
    %cst_10 = arith.constant 0.000000e+00 : f32
    %13 = vector.broadcast %cst_10 : f32 to vector<8x32xf32>
    %14 = arith.maximumf %12, %13 : vector<8x32xf32>
    %c0_11 = arith.constant 0 : index
    %c0_12 = arith.constant 0 : index
    %15 = vector.load %arg4[%c0_11, %c0_12] : memref<32x20xf32, #tpu.memory_space<vmem>>, vector<32x20xf32>
    %cst_13 = arith.constant dense<0.000000e+00> : vector<8x20xf32>
    %16 = tpu.matmul %14, %15, %cst_13 {dimension_numbers = #tpu.dot_dimension_numbers<[1], [0], [0], [1], [0, 0, 1, 1], [], []>} : vector<8x32xf32>, vector<32x20xf32>, vector<8x20xf32> -> vector<8x20xf32>
    %c0_14 = arith.constant 0 : index
    %c0_15 = arith.constant 0 : index
    %17 = vector.load %arg5[%c0_14, %c0_15] : memref<5x20xf32, #tpu.memory_space<vmem>>, vector<1x20xf32>
    %18 = vector.broadcast %17 : vector<1x20xf32> to vector<8x20xf32>
    %19 = arith.addf %16, %18 : vector<8x20xf32>
    %c1_16 = arith.constant 1 : index
    %c0_17 = arith.constant 0 : index
    %20 = vector.load %arg5[%c1_16, %c0_17] : memref<5x20xf32, #tpu.memory_space<vmem>>, vector<1x20xf32>
    %c2 = arith.constant 2 : index
    %c0_18 = arith.constant 0 : index
    %21 = vector.load %arg5[%c2, %c0_18] : memref<5x20xf32, #tpu.memory_space<vmem>>, vector<1x20xf32>
    %c3 = arith.constant 3 : index
    %c0_19 = arith.constant 0 : index
    %22 = vector.load %arg5[%c3, %c0_19] : memref<5x20xf32, #tpu.memory_space<vmem>>, vector<1x20xf32>
    %c4 = arith.constant 4 : index
    %c0_20 = arith.constant 0 : index
    %23 = vector.load %arg5[%c4, %c0_20] : memref<5x20xf32, #tpu.memory_space<vmem>>, vector<1x20xf32>
    %cst_21 = arith.constant 5.000000e-01 : f32
    %24 = vector.broadcast %cst_21 : f32 to vector<1x20xf32>
    %25 = arith.cmpf ogt, %20, %24 : vector<1x20xf32>
    %26 = arith.negf %19 : vector<8x20xf32>
    %27 = math.exp %26 : vector<8x20xf32>
    %cst_22 = arith.constant 1.000000e+00 : f32
    %28 = vector.broadcast %cst_22 : f32 to vector<8x20xf32>
    %29 = arith.addf %28, %27 : vector<8x20xf32>
    %30 = arith.divf %28, %29 : vector<8x20xf32>
    %31 = vector.shape_cast %25 : vector<1x20xi1> to vector<1x20xi1>
    %32 = vector.broadcast %31 : vector<1x20xi1> to vector<8x20xi1>
    %33 = arith.select %32, %30, %19 : vector<8x20xi1>, vector<8x20xf32>
    %cst_23 = arith.constant 5.000000e-01 : f32
    %34 = vector.broadcast %cst_23 : f32 to vector<8x20xf32>
    %35 = arith.mulf %34, %33 : vector<8x20xf32>
    %cst_24 = arith.constant 0.707106769 : f32
    %36 = vector.broadcast %cst_24 : f32 to vector<8x20xf32>
    %37 = arith.mulf %33, %36 : vector<8x20xf32>
    %38 = math.erf %37 : vector<8x20xf32>
    %cst_25 = arith.constant 1.000000e+00 : f32
    %39 = vector.broadcast %cst_25 : f32 to vector<8x20xf32>
    %40 = arith.addf %39, %38 : vector<8x20xf32>
    %41 = arith.mulf %35, %40 : vector<8x20xf32>
    %cst_26 = arith.constant 5.000000e-01 : f32
    %42 = vector.broadcast %cst_26 : f32 to vector<1x20xf32>
    %43 = arith.cmpf ogt, %21, %42 : vector<1x20xf32>
    %44 = vector.shape_cast %43 : vector<1x20xi1> to vector<1x20xi1>
    %45 = vector.broadcast %44 : vector<1x20xi1> to vector<8x20xi1>
    %46 = arith.select %45, %41, %33 : vector<8x20xi1>, vector<8x20xf32>
    %47 = vector.broadcast %22 : vector<1x20xf32> to vector<8x20xf32>
    %48 = arith.mulf %47, %46 : vector<8x20xf32>
    %49 = vector.broadcast %23 : vector<1x20xf32> to vector<8x20xf32>
    %50 = arith.addf %49, %48 : vector<8x20xf32>
    %c0_27 = arith.constant 0 : index
    %c0_28 = arith.constant 0 : index
    %51 = vector.load %arg6[%c0_27, %c0_28] : memref<8x20xf32, #tpu.memory_space<vmem>>, vector<8x20xf32>
    tpu.vector_store %arg6[%c0_27, %c0_28], %50 {strides = array<i32>} : memref<8x20xf32, #tpu.memory_space<vmem>>, vector<8x20xf32>,
    return
  }
}

</mosaic_0001>

<llo_original>
// kernel: sub.1
$region0: #{sub.1}
  #allocation0 [shape = 's32[1]{0}', space=sflag, size = 0x4, scoped, tag = 'scoped memory for sub.1']
  %s0 = inlined_call_operand.vmem [shape: f32[1,4], index: 0, kind: input, shape index: {}]
  %s1 = inlined_call_operand.vmem [shape: f32[1,4], index: 1, kind: input, shape index: {}]
  %s2 = inlined_call_operand.vmem [shape: f32[1,4], index: 2, kind: output, shape index: {}]
  %v3 = vld [vmem:[%s0] sm:$0x1]
  %v4 = vld [vmem:[%s1] sm:$0x1]
  %5 = xla_tuple %v3, %v4
  %6 = xla_tuple %5
  %v7 = vsub.f32 %v3, %v4
  %8 = xla_tuple %v7
  %9 = vst [vmem:[%s2] sm:$0x1] %v7

// kernel: multivariate_normal_artist_forward.1
$region0: #{multivariate_normal_artist_forward.1}
  #allocation0 [shape = 'u32[]', space=smem, size = 0x4, offset = 0x4, fixed_abs, tag = 'smem constant byte address 0x4 - core index']
  #allocation1 [shape = 'u32[144,128]{1,0:T(1,128)}', space=vmem, size = 0x12000, scoped, tag = 'internal scratch']
  %s0 = inlined_call_operand.vmem [shape: f32[8,4], index: 0, kind: input, shape index: {}]
  %s1 = inlined_call_operand.vmem [shape: f32[4,32], index: 1, kind: input, shape index: {}]
  %s2 = inlined_call_operand.vmem [shape: f32[2,32], index: 2, kind: input, shape index: {}]
  %s3 = inlined_call_operand.vmem [shape: f32[32,32], index: 3, kind: input, shape index: {}]
  %s4 = inlined_call_operand.vmem [shape: f32[32,20], index: 4, kind: input, shape index: {}]
  %s5 = inlined_call_operand.vmem [shape: f32[5,20], index: 5, kind: input, shape index: {}]
  %s6 = inlined_call_operand.vmem [shape: f32[8,20], index: 6, kind: output, shape index: {}]
  %s7 = sld [smem:[#allocation0]]
  $region34: #{multivariate_normal_artist_forward.1} parent=0
    _
  %s9 = ssub.s32 1, %s7
  %s10 = scalar_select 0, %s9, %s7
  // Predicated region
  $region2: #{multivariate_normal_artist_forward.1} parent=0 // pred_check
    _
  $region3: #{multivariate_normal_artist_forward.1} parent=0 // pred_check_branch
    %12 = sbr.rel (0) target = $region5
  $region4: #{multivariate_normal_artist_forward.1} parent=0 // pred_region
    _
  $region5: #{multivariate_normal_artist_forward.1} parent=0 // pred_fallthru
    _
  // Predicated region
  $region6: #{multivariate_normal_artist_forward.1} parent=0 // pred_check
    _
  $region7: #{multivariate_normal_artist_forward.1} parent=0 // pred_check_branch
    %14 = sbr.rel (0) target = $region9
  $region8: #{multivariate_normal_artist_forward.1} parent=0 // pred_region
    _
  $region9: #{multivariate_normal_artist_forward.1} parent=0 // pred_fallthru
    _
  // Predicated region
  $region10: #{multivariate_normal_artist_forward.1} parent=0 // pred_check
    _
  $region11: #{multivariate_normal_artist_forward.1} parent=0 // pred_check_branch
    %16 = sbr.rel (0) target = $region13
  $region12: #{multivariate_normal_artist_forward.1} parent=0 // pred_region
    _
  $region13: #{multivariate_normal_artist_forward.1} parent=0 // pred_fallthru
    _
  // Predicated region
  $region14: #{multivariate_normal_artist_forward.1} parent=0 // pred_check
    _
  $region15: #{multivariate_normal_artist_forward.1} parent=0 // pred_check_branch
    %18 = sbr.rel (0) target = $region17
  $region16: #{multivariate_normal_artist_forward.1} parent=0 // pred_region
    _
  $region17: #{multivariate_normal_artist_forward.1} parent=0 // pred_fallthru
    _
  // Predicated region
  $region18: #{multivariate_normal_artist_forward.1} parent=0 // pred_check
    _
  $region19: #{multivariate_normal_artist_forward.1} parent=0 // pred_check_branch
    %20 = sbr.rel (0) target = $region21
  $region20: #{multivariate_normal_artist_forward.1} parent=0 // pred_region
    _
  $region21: #{multivariate_normal_artist_forward.1} parent=0 // pred_fallthru
    _
  // Predicated region
  $region22: #{multivariate_normal_artist_forward.1} parent=0 // pred_check
    _
  $region23: #{multivariate_normal_artist_forward.1} parent=0 // pred_check_branch
    %22 = sbr.rel (0) target = $region25
  $region24: #{multivariate_normal_artist_forward.1} parent=0 // pred_region
    _
  $region25: #{multivariate_normal_artist_forward.1} parent=0 // pred_fallthru
    _
  %v23 = vld [vmem:[%s0] sm:$0xff]
  %v24 = vld [vmem:[%s1] sm:$0xf]
  %v25 = vld [vmem:[%s2] sm:$0x1]
  %v26 = vlaneseq
  %v27 = vshrl.u32 %v26, 7
  %v28 = vsub.s32 0, %v27
  %v29 = vrot.slane %v25, %v28
  %vm30 = vcmask 31744
  %v32 = vsel %vm30, %v23, 0
  %vm34 = vcmask 1043456
  %v36 = vsel %vm34, %v24, 0
  %38 = vmatprep.subr.mxu0 0.0
  %39 = vmatpush1.msra.mxu0 0.0
  %40 = vmatprep.subr.mxu0 0.0
  %41 = vmatpush1.msra.mxu0 0.0
  %42 = vmatprep.subr.mxu0 0.0
  %43 = vmatpush1.msra.mxu0 0.0
  %44 = vmatprep.subr.mxu0 0.0
  %45 = vmatpush1.msra.mxu0 0.0
  %46 = vmatprep.subr.mxu0 0.0
  %47 = vmatpush1.msra.mxu0 0.0
  %48 = vmatprep.subr.mxu0 0.0
  %49 = vmatpush1.msra.mxu0 0.0
  %50 = vmatprep.subr.mxu0 0.0
  %51 = vmatpush1.msra.mxu0 0.0
  %52 = vmatprep.subr.mxu0 0.0
  %53 = vmatpush1.msra.mxu0 0.0
  %54 = vmatprep.subr.mxu0 0.0
  %55 = vmatpush1.msra.mxu0 0.0
  %56 = vmatprep.subr.mxu0 0.0
  %57 = vmatpush1.msra.mxu0 0.0
  %58 = vmatprep.subr.mxu0 0.0
  %59 = vmatpush1.msra.mxu0 0.0
  %60 = vmatprep.subr.mxu0 0.0
  %61 = vmatpush1.msra.mxu0 0.0
  %62 = vmatprep.subr.mxu0 0.0
  %63 = vmatpush1.msra.mxu0 0.0
  %64 = vmatprep.subr.mxu0 0.0
  %65 = vmatpush1.msra.mxu0 0.0
  %66 = vmatprep.subr.mxu0 0.0
  %67 = vmatpush1.msra.mxu0 0.0
  %68 = vmatprep.subr.mxu0 0.0
  %69 = vmatpush1.msra.mxu0 %v36
  %70 = vmatprep.subr.mxu0 0.0
  %71 = vmatpush2.msra.mxu0 0.0
  %72 = vmatprep.subr.mxu0 0.0
  %73 = vmatpush2.msra.mxu0 0.0
  %74 = vmatprep.subr.mxu0 0.0
  %75 = vmatpush2.msra.mxu0 0.0
  %76 = vmatprep.subr.mxu0 0.0
  %77 = vmatpush2.msra.mxu0 0.0
  %78 = vmatprep.subr.mxu0 0.0
  %79 = vmatpush2.msra.mxu0 0.0
  %80 = vmatprep.subr.mxu0 0.0
  %81 = vmatpush2.msra.mxu0 0.0
  %82 = vmatprep.subr.mxu0 0.0
  %83 = vmatpush2.msra.mxu0 0.0
  %84 = vmatprep.subr.mxu0 0.0
  %85 = vmatpush2.msra.mxu0 0.0
  %86 = vmatprep.subr.mxu0 0.0
  %87 = vmatpush2.msra.mxu0 0.0
  %88 = vmatprep.subr.mxu0 0.0
  %89 = vmatpush2.msra.mxu0 0.0
  %90 = vmatprep.subr.mxu0 0.0
  %91 = vmatpush2.msra.mxu0 0.0
  %92 = vmatprep.subr.mxu0 0.0
  %93 = vmatpush2.msra.mxu0 0.0
  %94 = vmatprep.subr.mxu0 0.0
  %95 = vmatpush2.msra.mxu0 0.0
  %96 = vmatprep.subr.mxu0 0.0
  %97 = vmatpush2.msra.mxu0 0.0
  %98 = vmatprep.subr.mxu0 0.0
  %99 = vmatpush2.msra.mxu0 0.0
  %100 = vmatprep.subr.mxu0 0.0
  %101 = vmatpush2.msra.mxu0 0.0
  %102 = vmatprep.mubr.f32.mxu0 0.0
  %103 = vmatmul.mubr.f32.gmra.mxu0 %v32
  %v104 = vpop.f32.mrf.mxu0
  %v105 = vadd.f32 %v29, %v104
  %v106 = vpop.f32.mrf.mxu0
  %107 = vdwg.mxu0
  %v108 = vmax.f32 %v105, 0.0
  %v109 = vld [vmem:[%s3] sm:$0xff]
  %v110 = vld [vmem:[%s3 + $0x8] sm:$0xff]
  %v111 = vld [vmem:[%s3 + $0x10] sm:$0xff]
  %v112 = vld [vmem:[%s3 + $0x18] sm:$0xff]
  %v113 = vld [vmem:[%s2 + $0x1] sm:$0x1]
  %v114 = vlaneseq
  %v115 = vshrl.u32 %v114, 7
  %v116 = vsub.s32 0, %v115
  %v117 = vrot.slane %v113, %v116
  %vm118 = vcmask 261120
  %v120 = vsel %vm118, %v108, 0
  %122 = vmatprep.subr.mxu0 0.0
  %123 = vmatpush1.msra.mxu0 0.0
  %124 = vmatprep.subr.mxu0 0.0
  %125 = vmatpush1.msra.mxu0 0.0
  %126 = vmatprep.subr.mxu0 0.0
  %127 = vmatpush1.msra.mxu0 0.0
  %128 = vmatprep.subr.mxu0 0.0
  %129 = vmatpush1.msra.mxu0 0.0
  %130 = vmatprep.subr.mxu0 0.0
  %131 = vmatpush1.msra.mxu0 0.0
  %132 = vmatprep.subr.mxu0 0.0
  %133 = vmatpush1.msra.mxu0 0.0
  %134 = vmatprep.subr.mxu0 0.0
  %135 = vmatpush1.msra.mxu0 0.0
  %136 = vmatprep.subr.mxu0 0.0
  %137 = vmatpush1.msra.mxu0 0.0
  %138 = vmatprep.subr.mxu0 0.0
  %139 = vmatpush1.msra.mxu0 0.0
  %140 = vmatprep.subr.mxu0 0.0
  %141 = vmatpush1.msra.mxu0 0.0
  %142 = vmatprep.subr.mxu0 0.0
  %143 = vmatpush1.msra.mxu0 0.0
  %144 = vmatprep.subr.mxu0 0.0
  %145 = vmatpush1.msra.mxu0 0.0
  %146 = vmatprep.subr.mxu0 0.0
  %147 = vmatpush1.msra.mxu0 %v112
  %148 = vmatprep.subr.mxu0 0.0
  %149 = vmatpush1.msra.mxu0 %v111
  %150 = vmatprep.subr.mxu0 0.0
  %151 = vmatpush1.msra.mxu0 %v110
  %152 = vmatprep.subr.mxu0 0.0
  %153 = vmatpush1.msra.mxu0 %v109
  %154 = vmatprep.subr.mxu0 0.0
  %155 = vmatpush2.msra.mxu0 0.0
  %156 = vmatprep.subr.mxu0 0.0
  %157 = vmatpush2.msra.mxu0 0.0
  %158 = vmatprep.subr.mxu0 0.0
  %159 = vmatpush2.msra.mxu0 0.0
  %160 = vmatprep.subr.mxu0 0.0
  %161 = vmatpush2.msra.mxu0 0.0
  %162 = vmatprep.subr.mxu0 0.0
  %163 = vmatpush2.msra.mxu0 0.0
  %164 = vmatprep.subr.mxu0 0.0
  %165 = vmatpush2.msra.mxu0 0.0
  %166 = vmatprep.subr.mxu0 0.0
  %167 = vmatpush2.msra.mxu0 0.0
  %168 = vmatprep.subr.mxu0 0.0
  %169 = vmatpush2.msra.mxu0 0.0
  %170 = vmatprep.subr.mxu0 0.0
  %171 = vmatpush2.msra.mxu0 0.0
  %172 = vmatprep.subr.mxu0 0.0
  %173 = vmatpush2.msra.mxu0 0.0
  %174 = vmatprep.subr.mxu0 0.0
  %175 = vmatpush2.msra.mxu0 0.0
  %176 = vmatprep.subr.mxu0 0.0
  %177 = vmatpush2.msra.mxu0 0.0
  %178 = vmatprep.subr.mxu0 0.0
  %179 = vmatpush2.msra.mxu0 0.0
  %180 = vmatprep.subr.mxu0 0.0
  %181 = vmatpush2.msra.mxu0 0.0
  %182 = vmatprep.subr.mxu0 0.0
  %183 = vmatpush2.msra.mxu0 0.0
  %184 = vmatprep.subr.mxu0 0.0
  %185 = vmatpush2.msra.mxu0 0.0
  %186 = vmatprep.mubr.f32.mxu0 0.0
  %187 = vmatmul.mubr.f32.gmra.mxu0 %v120
  %v188 = vpop.f32.mrf.mxu0
  %v189 = vadd.f32 %v117, %v188
  %v190 = vpop.f32.mrf.mxu0
  %191 = vdwg.mxu0
  %v192 = vmax.f32 %v189, 0.0
  %v193 = vld [vmem:[%s4] sm:$0xff]
  %v194 = vld [vmem:[%s4 + $0x8] sm:$0xff]
  %v195 = vld [vmem:[%s4 + $0x10] sm:$0xff]
  %v196 = vld [vmem:[%s4 + $0x18] sm:$0xff]
  %v197 = vld [vmem:[%s5] sm:$0x1]
  %v198 = vlaneseq
  %v199 = vshrl.u32 %v198, 7
  %v200 = vsub.s32 0, %v199
  %v201 = vrot.slane %v197, %v200
  %v203 = vsel %vm118, %v192, 0
  %205 = vmatprep.subr.mxu0 0.0
  %206 = vmatpush1.msra.mxu0 0.0
  %207 = vmatprep.subr.mxu0 0.0
  %208 = vmatpush1.msra.mxu0 0.0
  %209 = vmatprep.subr.mxu0 0.0
  %210 = vmatpush1.msra.mxu0 0.0
  %211 = vmatprep.subr.mxu0 0.0
  %212 = vmatpush1.msra.mxu0 0.0
  %213 = vmatprep.subr.mxu0 0.0
  %214 = vmatpush1.msra.mxu0 0.0
  %215 = vmatprep.subr.mxu0 0.0
  %216 = vmatpush1.msra.mxu0 0.0
  %217 = vmatprep.subr.mxu0 0.0
  %218 = vmatpush1.msra.mxu0 0.0
  %219 = vmatprep.subr.mxu0 0.0
  %220 = vmatpush1.msra.mxu0 0.0
  %221 = vmatprep.subr.mxu0 0.0
  %222 = vmatpush1.msra.mxu0 0.0
  %223 = vmatprep.subr.mxu0 0.0
  %224 = vmatpush1.msra.mxu0 0.0
  %225 = vmatprep.subr.mxu0 0.0
  %226 = vmatpush1.msra.mxu0 0.0
  %227 = vmatprep.subr.mxu0 0.0
  %228 = vmatpush1.msra.mxu0 0.0
  %229 = vmatprep.subr.mxu0 0.0
  %230 = vmatpush1.msra.mxu0 %v196
  %231 = vmatprep.subr.mxu0 0.0
  %232 = vmatpush1.msra.mxu0 %v195
  %233 = vmatprep.subr.mxu0 0.0
  %234 = vmatpush1.msra.mxu0 %v194
  %235 = vmatprep.subr.mxu0 0.0
  %236 = vmatpush1.msra.mxu0 %v193
  %237 = vmatprep.subr.mxu0 0.0
  %238 = vmatpush2.msra.mxu0 0.0
  %239 = vmatprep.subr.mxu0 0.0
  %240 = vmatpush2.msra.mxu0 0.0
  %241 = vmatprep.subr.mxu0 0.0
  %242 = vmatpush2.msra.mxu0 0.0
  %243 = vmatprep.subr.mxu0 0.0
  %244 = vmatpush2.msra.mxu0 0.0
  %245 = vmatprep.subr.mxu0 0.0
  %246 = vmatpush2.msra.mxu0 0.0
  %247 = vmatprep.subr.mxu0 0.0
  %248 = vmatpush2.msra.mxu0 0.0
  %249 = vmatprep.subr.mxu0 0.0
  %250 = vmatpush2.msra.mxu0 0.0
  %251 = vmatprep.subr.mxu0 0.0
  %252 = vmatpush2.msra.mxu0 0.0
  %253 = vmatprep.subr.mxu0 0.0
  %254 = vmatpush2.msra.mxu0 0.0
  %255 = vmatprep.subr.mxu0 0.0
  %256 = vmatpush2.msra.mxu0 0.0
  %257 = vmatprep.subr.mxu0 0.0
  %258 = vmatpush2.msra.mxu0 0.0
  %259 = vmatprep.subr.mxu0 0.0
  %260 = vmatpush2.msra.mxu0 0.0
  %261 = vmatprep.subr.mxu0 0.0
  %262 = vmatpush2.msra.mxu0 0.0
  %263 = vmatprep.subr.mxu0 0.0
  %264 = vmatpush2.msra.mxu0 0.0
  %265 = vmatprep.subr.mxu0 0.0
  %266 = vmatpush2.msra.mxu0 0.0
  %267 = vmatprep.subr.mxu0 0.0
  %268 = vmatpush2.msra.mxu0 0.0
  %269 = vmatprep.mubr.f32.mxu0 0.0
  %270 = vmatmul.mubr.f32.gmra.mxu0 %v203
  %v271 = vpop.f32.mrf.mxu0
  %v272 = vadd.f32 %v201, %v271
  %v273 = vpop.f32.mrf.mxu0
  %274 = vdwg.mxu0
  %v275 = vld [vmem:[%s5 + $0x1] sm:$0x1]
  %v276 = vld [vmem:[%s5 + $0x2] sm:$0x1]
  %v277 = vld [vmem:[%s5 + $0x3] sm:$0x1]
  %v278 = vld [vmem:[%s5 + $0x4] sm:$0x1]
  %vm279 = vcmp.gt.f32.partialorder %v275, 0.5
  %v280 = vxor.u32 %v272, 2147483648
  %v281 = vmul.f32 %v280, 1.442695
  %v282 = vpow.pop %v281
  %v283 = vadd.f32 %v282, 1.0
  %v284 = vrcp.pop %v283
  %v285 = vmul.f32 1.0, %v284
  %v286 = vsel %vm279, 1, 0
  %v287 = vlaneseq
  %v288 = vshrl.u32 %v287, 7
  %v289 = vsub.s32 0, %v288
  %v290 = vrot.slane %v286, %v289
  %vm291 = vcmp.eq.s32.totalorder %v290, 1
  %v292 = vsel %vm291, %v285, %v272
  %v293 = vmul.f32 %v292, 0.5
  %v294 = vmul.f32 %v292, 0.70710677
  %v295 = verf.f32.pop %v294
  %v296 = vadd.f32 %v295, 1.0
  %v297 = vmul.f32 %v293, %v296
  %vm298 = vcmp.gt.f32.partialorder %v276, 0.5
  %v299 = vsel %vm298, 1, 0
  %v300 = vlaneseq
  %v301 = vshrl.u32 %v300, 7
  %v302 = vsub.s32 0, %v301
  %v303 = vrot.slane %v299, %v302
  %vm304 = vcmp.eq.s32.totalorder %v303, 1
  %v305 = vsel %vm304, %v297, %v292
  %v306 = vlaneseq
  %v307 = vshrl.u32 %v306, 7
  %v308 = vsub.s32 0, %v307
  %v309 = vrot.slane %v277, %v308
  %v310 = vmul.f32 %v309, %v305
  %v311 = vlaneseq
  %v312 = vshrl.u32 %v311, 7
  %v313 = vsub.s32 0, %v312
  %v314 = vrot.slane %v278, %v313
  %v315 = vadd.f32 %v314, %v310
  %vm316 = vcmask 162816
  %317 = vst.msk [vmem:[%s6] sm:$0xff] %vm316, %v315
  // Predicated region
  $region26: #{multivariate_normal_artist_forward.1} parent=0 // pred_check
    _
  $region27: #{multivariate_normal_artist_forward.1} parent=0 // pred_check_branch
    %319 = sbr.rel (0) target = $region29
  $region28: #{multivariate_normal_artist_forward.1} parent=0 // pred_region
    _
  $region29: #{multivariate_normal_artist_forward.1} parent=0 // pred_fallthru
    _
  // Predicated region
  $region30: #{multivariate_normal_artist_forward.1} parent=0 // pred_check
    _
  $region31: #{multivariate_normal_artist_forward.1} parent=0 // pred_check_branch
    %321 = sbr.rel (0) target = $region33
  $region32: #{multivariate_normal_artist_forward.1} parent=0 // pred_region
    _
  $region33: #{multivariate_normal_artist_forward.1} parent=0 // pred_fallthru
    _

</llo_original>
